<compile_context>
chip_gen: v6e
topology: v6e:2x2x1
jax: 0.10.0
libtpu: 0.0.40
codegen_flags: <defaults>
</compile_context>

<pallas_src>
import jax
import jax.numpy as jnp
from jax.experimental import pallas as pl
from jax.experimental.pallas import tpu as pltpu


TILE_N = 131072  # batch rows per grid step at large N (multiple of 1024)


def _round_up(a, b):
    return -(-a // b) * b


# ----------------------------------------------------------------------------- kernel


def mlp_kernel(w1_ref, w2_ref, w3_ref, x_ref, o_ref):
    """w*_ref: flat augmented weights in SMEM (row = [w_0..w_{in-1}, bias]).
    x_ref: (8, R, 128) VMEM tile, batch on sublanes+lanes.
    o_ref: (R, 128) VMEM tile."""

    def layer(w_ref, n_out, n_in, xs):
        outs = []
        stride = n_in + 1  # augmented row length: n_in weights + 1 bias
        for o in range(n_out):
            base = o * stride
            # bias (scalar splat) + unrolled scalar x vector MACs on the VPU
            acc = w_ref[base + n_in] + w_ref[base] * xs[0]
            for k in range(1, n_in):
                acc = acc + w_ref[base + k] * xs[k]
            outs.append(jax.nn.sigmoid(acc))  # EUP
        return outs

    xs = [x_ref[k] for k in range(8)]  # eight full-vreg (R, 128) slabs
    h1 = layer(w1_ref, 6, 8, xs)
    h2 = layer(w2_ref, 4, 6, h1)
    h3 = layer(w3_ref, 1, 4, h2)
    o_ref[...] = h3[0].astype(o_ref.dtype)  # lane- and sublane-dense store


def _mlp_pallas(x_packed, w1a, w2a, w3a, tile_rows):
    """x_packed: (8, NB, 128) f32; returns (NB, 128) f32. NB % tile_rows == 0."""
    nb = x_packed.shape[1]
    r = tile_rows
    grid = (nb // r,)
    n_rows = nb * 128
    return pl.pallas_call(
        mlp_kernel,
        out_shape=jax.ShapeDtypeStruct((nb, 128), jnp.float32),
        grid_spec=pltpu.PrefetchScalarGridSpec(
            num_scalar_prefetch=0,
            grid=grid,
            in_specs=[
                # Tiny augmented weights: whole arrays resident in SMEM,
                # read as scalars inside the kernel.
                pl.BlockSpec(memory_space=pltpu.MemorySpace.SMEM),  # (54,)
                pl.BlockSpec(memory_space=pltpu.MemorySpace.SMEM),  # (28,)
                pl.BlockSpec(memory_space=pltpu.MemorySpace.SMEM),  # (5,)
                # x streams along the batch grid axis.
                pl.BlockSpec((8, r, 128), lambda i: (0, i, 0)),
            ],
            out_specs=pl.BlockSpec((r, 128), lambda i: (i, 0)),
        ),
        compiler_params=pltpu.CompilerParams(
            dimension_semantics=("parallel",),   # megacore sharding on v7x
            vmem_limit_bytes=32 * 1024 * 1024,   # raise v5e's 16 MiB default
        ),
        cost_estimate=pl.CostEstimate(
            flops=2 * n_rows * (8 * 6 + 6 * 4 + 4 * 1),
            transcendentals=n_rows * 11,
            bytes_accessed=n_rows * (8 + 1) * 4 + (54 + 28 + 5) * 4,
        ),
    )(w1a, w2a, w3a, x_packed)


# ----------------------------------------------------------------------------- wrappers


def flatten_params(params):
    """Fold each bias into its weight matrix as a trailing column, flatten to 1-D."""
    w1, b1, w2, b2, w3, b3 = params
    w1a = jnp.concatenate([w1, b1[:, None]], axis=1).reshape(-1).astype(jnp.float32)
    w2a = jnp.concatenate([w2, b2[:, None]], axis=1).reshape(-1).astype(jnp.float32)
    w3a = jnp.concatenate([w3, b3[:, None]], axis=1).reshape(-1).astype(jnp.float32)
    return w1a, w2a, w3a


def mlp_forward_packed(x_packed, flat_params, tile_n=TILE_N):
    """Zero-copy entry point: x_packed is (8, NB, 128) f32 feature-major."""
    nb = x_packed.shape[1]
    tr = min(max(tile_n // 128, 1), nb)
    if nb % tr:
        tr = nb  # single-block fallback (callers should pad NB for best perf)
    return _mlp_pallas(x_packed, *flat_params, tr)


def mlp_forward(x, params, tile_n=TILE_N):
    """PyTorch-layout convenience wrapper. x: (N, 8) f32 -> (N, 1) f32.
    NOTE: the transpose/pad below is a separate XLA pass; upstream code that can
    produce feature-major (8, NB, 128) data should call mlp_forward_packed."""
    n = x.shape[0]
    flat = flatten_params(params)
    n128 = _round_up(max(n, 1), 128)
    tile = min(tile_n, n128)              # rows per grid step (multiple of 128)
    n_pad = _round_up(n128, tile)
    xp = jnp.zeros((n_pad, 8), jnp.float32).at[:n, :].set(x.astype(jnp.float32))
    x_packed = xp.T.reshape(8, n_pad // 128, 128)   # memory-order-preserving pack
    out_packed = mlp_forward_packed(x_packed, flat, tile_n=tile)
    return out_packed.reshape(n_pad)[:n][:, None]


# ----------------------------------------------------------------------------- reference


def init_params(key):
    # PyTorch-style Linear init: W (out, in), b (out,), U(-1/sqrt(fan_in), +).
    def linear(key, fan_in, fan_out):
        kw, kb = jax.random.split(key)
        bound = 1.0 / jnp.sqrt(jnp.float32(fan_in))
        w = jax.random.uniform(kw, (fan_out, fan_in), jnp.float32, -bound, bound)
        b = jax.random.uniform(kb, (fan_out,), jnp.float32, -bound, bound)
        return w, b

    k1, k2, k3 = jax.random.split(key, 3)
    w1, b1 = linear(k1, 8, 6)
    w2, b2 = linear(k2, 6, 4)
    w3, b3 = linear(k3, 4, 1)
    return (w1, b1, w2, b2, w3, b3)


def reference_forward(x, params):
    w1, b1, w2, b2, w3, b3 = params
    h = jax.nn.sigmoid(x @ w1.T + b1)
    h = jax.nn.sigmoid(h @ w2.T + b2)
    return jax.nn.sigmoid(h @ w3.T + b3)


if __name__ == "__main__":
    key = jax.random.PRNGKey(0)
    kx, kp = jax.random.split(key)
    params = init_params(kp)

    # Small multi-step grid: 2048 rows with a 1024-row tile -> 2 pipelined steps.
    x = jax.random.normal(kx, (2048, 8), dtype=jnp.float32)
    out = jax.block_until_ready(mlp_forward(x, params, tile_n=1024))
    ref = reference_forward(x, params)
    assert out.shape == (2048, 1)
    assert jnp.allclose(out, ref, atol=1e-5, rtol=1e-5)

    # Ragged small batch through the default (large-tile, single-step) path.
    x2 = jax.random.normal(kx, (200, 8), dtype=jnp.float32)
    out2 = jax.block_until_ready(mlp_forward(x2, params))
    ref2 = reference_forward(x2, params)
    assert out2.shape == (200, 1)
    assert jnp.allclose(out2, ref2, atol=1e-5, rtol=1e-5)

    # Packed (feature-major) entry point, skipping the wrapper transpose/pad.
    x3_packed = jnp.transpose(x[:1024], (1, 0)).reshape(8, 8, 128)
    out3 = jax.block_until_ready(
        mlp_forward_packed(x3_packed, flatten_params(params)))
    ref3 = reference_forward(x[:1024], params)
    assert out3.shape == (8, 128)
    assert jnp.allclose(out3.reshape(1024, 1), ref3, atol=1e-5, rtol=1e-5)

    print("KERNEL_OK")
</pallas_src>

<mosaic_0001>
module attributes {stable_mosaic.version = 11 : i64} {
  func.func @mlp_kernel(%arg0: i32, %arg1: memref<54xf32, #tpu.memory_space<smem>>, %arg2: memref<28xf32, #tpu.memory_space<smem>>, %arg3: memref<5xf32, #tpu.memory_space<smem>>, %arg4: memref<8x8x128xf32, #tpu.memory_space<vmem>>, %arg5: memref<8x128xf32, #tpu.memory_space<vmem>>) attributes {dimension_semantics = [#tpu.dimension_semantics<parallel>], iteration_bounds = array<i64: 2>, scalar_prefetch = 0 : i64, scratch_operands = 0 : i64, tpu.core_type = #tpu.core_type<tc>, window_params = [{transform_indices = @transform_0, window_bounds = array<i64: 54>}, {transform_indices = @transform_1, window_bounds = array<i64: 28>}, {transform_indices = @transform_2, window_bounds = array<i64: 5>}, {transform_indices = @transform_3, window_bounds = array<i64: 8, 8, 128>}, {transform_indices = @transform_4, window_bounds = array<i64: 8, 128>}]} {
    %c0 = arith.constant 0 : index
    %c0_0 = arith.constant 0 : index
    %c0_1 = arith.constant 0 : index
    %0 = vector.load %arg4[%c0, %c0_0, %c0_1] : memref<8x8x128xf32, #tpu.memory_space<vmem>>, vector<1x8x128xf32>
    %1 = vector.shape_cast %0 : vector<1x8x128xf32> to vector<8x128xf32>
    %c1 = arith.constant 1 : index
    %c0_2 = arith.constant 0 : index
    %c0_3 = arith.constant 0 : index
    %2 = vector.load %arg4[%c1, %c0_2, %c0_3] : memref<8x8x128xf32, #tpu.memory_space<vmem>>, vector<1x8x128xf32>
    %3 = vector.shape_cast %2 : vector<1x8x128xf32> to vector<8x128xf32>
    %c2 = arith.constant 2 : index
    %c0_4 = arith.constant 0 : index
    %c0_5 = arith.constant 0 : index
    %4 = vector.load %arg4[%c2, %c0_4, %c0_5] : memref<8x8x128xf32, #tpu.memory_space<vmem>>, vector<1x8x128xf32>
    %5 = vector.shape_cast %4 : vector<1x8x128xf32> to vector<8x128xf32>
    %c3 = arith.constant 3 : index
    %c0_6 = arith.constant 0 : index
    %c0_7 = arith.constant 0 : index
    %6 = vector.load %arg4[%c3, %c0_6, %c0_7] : memref<8x8x128xf32, #tpu.memory_space<vmem>>, vector<1x8x128xf32>
    %7 = vector.shape_cast %6 : vector<1x8x128xf32> to vector<8x128xf32>
    %c4 = arith.constant 4 : index
    %c0_8 = arith.constant 0 : index
    %c0_9 = arith.constant 0 : index
    %8 = vector.load %arg4[%c4, %c0_8, %c0_9] : memref<8x8x128xf32, #tpu.memory_space<vmem>>, vector<1x8x128xf32>
    %9 = vector.shape_cast %8 : vector<1x8x128xf32> to vector<8x128xf32>
    %c5 = arith.constant 5 : index
    %c0_10 = arith.constant 0 : index
    %c0_11 = arith.constant 0 : index
    %10 = vector.load %arg4[%c5, %c0_10, %c0_11] : memref<8x8x128xf32, #tpu.memory_space<vmem>>, vector<1x8x128xf32>
    %11 = vector.shape_cast %10 : vector<1x8x128xf32> to vector<8x128xf32>
    %c6 = arith.constant 6 : index
    %c0_12 = arith.constant 0 : index
    %c0_13 = arith.constant 0 : index
    %12 = vector.load %arg4[%c6, %c0_12, %c0_13] : memref<8x8x128xf32, #tpu.memory_space<vmem>>, vector<1x8x128xf32>
    %13 = vector.shape_cast %12 : vector<1x8x128xf32> to vector<8x128xf32>
    %c7 = arith.constant 7 : index
    %c0_14 = arith.constant 0 : index
    %c0_15 = arith.constant 0 : index
    %14 = vector.load %arg4[%c7, %c0_14, %c0_15] : memref<8x8x128xf32, #tpu.memory_space<vmem>>, vector<1x8x128xf32>
    %15 = vector.shape_cast %14 : vector<1x8x128xf32> to vector<8x128xf32>
    %c8 = arith.constant 8 : index
    %16 = memref.load %arg1[%c8] : memref<54xf32, #tpu.memory_space<smem>>
    %c0_16 = arith.constant 0 : index
    %17 = memref.load %arg1[%c0_16] : memref<54xf32, #tpu.memory_space<smem>>
    %18 = vector.broadcast %17 : f32 to vector<8x128xf32>
    %19 = arith.mulf %18, %1 : vector<8x128xf32>
    %20 = vector.broadcast %16 : f32 to vector<8x128xf32>
    %21 = arith.addf %20, %19 : vector<8x128xf32>
    %c1_17 = arith.constant 1 : index
    %22 = memref.load %arg1[%c1_17] : memref<54xf32, #tpu.memory_space<smem>>
    %23 = vector.broadcast %22 : f32 to vector<8x128xf32>
    %24 = arith.mulf %23, %3 : vector<8x128xf32>
    %25 = arith.addf %21, %24 : vector<8x128xf32>
    %c2_18 = arith.constant 2 : index
    %26 = memref.load %arg1[%c2_18] : memref<54xf32, #tpu.memory_space<smem>>
    %27 = vector.broadcast %26 : f32 to vector<8x128xf32>
    %28 = arith.mulf %27, %5 : vector<8x128xf32>
    %29 = arith.addf %25, %28 : vector<8x128xf32>
    %c3_19 = arith.constant 3 : index
    %30 = memref.load %arg1[%c3_19] : memref<54xf32, #tpu.memory_space<smem>>
    %31 = vector.broadcast %30 : f32 to vector<8x128xf32>
    %32 = arith.mulf %31, %7 : vector<8x128xf32>
    %33 = arith.addf %29, %32 : vector<8x128xf32>
    %c4_20 = arith.constant 4 : index
    %34 = memref.load %arg1[%c4_20] : memref<54xf32, #tpu.memory_space<smem>>
    %35 = vector.broadcast %34 : f32 to vector<8x128xf32>
    %36 = arith.mulf %35, %9 : vector<8x128xf32>
    %37 = arith.addf %33, %36 : vector<8x128xf32>
    %c5_21 = arith.constant 5 : index
    %38 = memref.load %arg1[%c5_21] : memref<54xf32, #tpu.memory_space<smem>>
    %39 = vector.broadcast %38 : f32 to vector<8x128xf32>
    %40 = arith.mulf %39, %11 : vector<8x128xf32>
    %41 = arith.addf %37, %40 : vector<8x128xf32>
    %c6_22 = arith.constant 6 : index
    %42 = memref.load %arg1[%c6_22] : memref<54xf32, #tpu.memory_space<smem>>
    %43 = vector.broadcast %42 : f32 to vector<8x128xf32>
    %44 = arith.mulf %43, %13 : vector<8x128xf32>
    %45 = arith.addf %41, %44 : vector<8x128xf32>
    %c7_23 = arith.constant 7 : index
    %46 = memref.load %arg1[%c7_23] : memref<54xf32, #tpu.memory_space<smem>>
    %47 = vector.broadcast %46 : f32 to vector<8x128xf32>
    %48 = arith.mulf %47, %15 : vector<8x128xf32>
    %49 = arith.addf %45, %48 : vector<8x128xf32>
    %50 = arith.negf %49 : vector<8x128xf32>
    %51 = math.exp %50 : vector<8x128xf32>
    %cst = arith.constant 1.000000e+00 : f32
    %52 = vector.broadcast %cst : f32 to vector<8x128xf32>
    %53 = arith.addf %52, %51 : vector<8x128xf32>
    %54 = arith.divf %52, %53 : vector<8x128xf32>
    %c17 = arith.constant 17 : index
    %55 = memref.load %arg1[%c17] : memref<54xf32, #tpu.memory_space<smem>>
    %c9 = arith.constant 9 : index
    %56 = memref.load %arg1[%c9] : memref<54xf32, #tpu.memory_space<smem>>
    %57 = vector.broadcast %56 : f32 to vector<8x128xf32>
    %58 = arith.mulf %57, %1 : vector<8x128xf32>
    %59 = vector.broadcast %55 : f32 to vector<8x128xf32>
    %60 = arith.addf %59, %58 : vector<8x128xf32>
    %c10 = arith.constant 10 : index
    %61 = memref.load %arg1[%c10] : memref<54xf32, #tpu.memory_space<smem>>
    %62 = vector.broadcast %61 : f32 to vector<8x128xf32>
    %63 = arith.mulf %62, %3 : vector<8x128xf32>
    %64 = arith.addf %60, %63 : vector<8x128xf32>
    %c11 = arith.constant 11 : index
    %65 = memref.load %arg1[%c11] : memref<54xf32, #tpu.memory_space<smem>>
    %66 = vector.broadcast %65 : f32 to vector<8x128xf32>
    %67 = arith.mulf %66, %5 : vector<8x128xf32>
    %68 = arith.addf %64, %67 : vector<8x128xf32>
    %c12 = arith.constant 12 : index
    %69 = memref.load %arg1[%c12] : memref<54xf32, #tpu.memory_space<smem>>
    %70 = vector.broadcast %69 : f32 to vector<8x128xf32>
    %71 = arith.mulf %70, %7 : vector<8x128xf32>
    %72 = arith.addf %68, %71 : vector<8x128xf32>
    %c13 = arith.constant 13 : index
    %73 = memref.load %arg1[%c13] : memref<54xf32, #tpu.memory_space<smem>>
    %74 = vector.broadcast %73 : f32 to vector<8x128xf32>
    %75 = arith.mulf %74, %9 : vector<8x128xf32>
    %76 = arith.addf %72, %75 : vector<8x128xf32>
    %c14 = arith.constant 14 : index
    %77 = memref.load %arg1[%c14] : memref<54xf32, #tpu.memory_space<smem>>
    %78 = vector.broadcast %77 : f32 to vector<8x128xf32>
    %79 = arith.mulf %78, %11 : vector<8x128xf32>
    %80 = arith.addf %76, %79 : vector<8x128xf32>
    %c15 = arith.constant 15 : index
    %81 = memref.load %arg1[%c15] : memref<54xf32, #tpu.memory_space<smem>>
    %82 = vector.broadcast %81 : f32 to vector<8x128xf32>
    %83 = arith.mulf %82, %13 : vector<8x128xf32>
    %84 = arith.addf %80, %83 : vector<8x128xf32>
    %c16 = arith.constant 16 : index
    %85 = memref.load %arg1[%c16] : memref<54xf32, #tpu.memory_space<smem>>
    %86 = vector.broadcast %85 : f32 to vector<8x128xf32>
    %87 = arith.mulf %86, %15 : vector<8x128xf32>
    %88 = arith.addf %84, %87 : vector<8x128xf32>
    %89 = arith.negf %88 : vector<8x128xf32>
    %90 = math.exp %89 : vector<8x128xf32>
    %cst_24 = arith.constant 1.000000e+00 : f32
    %91 = vector.broadcast %cst_24 : f32 to vector<8x128xf32>
    %92 = arith.addf %91, %90 : vector<8x128xf32>
    %93 = arith.divf %91, %92 : vector<8x128xf32>
    %c26 = arith.constant 26 : index
    %94 = memref.load %arg1[%c26] : memref<54xf32, #tpu.memory_space<smem>>
    %c18 = arith.constant 18 : index
    %95 = memref.load %arg1[%c18] : memref<54xf32, #tpu.memory_space<smem>>
    %96 = vector.broadcast %95 : f32 to vector<8x128xf32>
    %97 = arith.mulf %96, %1 : vector<8x128xf32>
    %98 = vector.broadcast %94 : f32 to vector<8x128xf32>
    %99 = arith.addf %98, %97 : vector<8x128xf32>
    %c19 = arith.constant 19 : index
    %100 = memref.load %arg1[%c19] : memref<54xf32, #tpu.memory_space<smem>>
    %101 = vector.broadcast %100 : f32 to vector<8x128xf32>
    %102 = arith.mulf %101, %3 : vector<8x128xf32>
    %103 = arith.addf %99, %102 : vector<8x128xf32>
    %c20 = arith.constant 20 : index
    %104 = memref.load %arg1[%c20] : memref<54xf32, #tpu.memory_space<smem>>
    %105 = vector.broadcast %104 : f32 to vector<8x128xf32>
    %106 = arith.mulf %105, %5 : vector<8x128xf32>
    %107 = arith.addf %103, %106 : vector<8x128xf32>
    %c21 = arith.constant 21 : index
    %108 = memref.load %arg1[%c21] : memref<54xf32, #tpu.memory_space<smem>>
    %109 = vector.broadcast %108 : f32 to vector<8x128xf32>
    %110 = arith.mulf %109, %7 : vector<8x128xf32>
    %111 = arith.addf %107, %110 : vector<8x128xf32>
    %c22 = arith.constant 22 : index
    %112 = memref.load %arg1[%c22] : memref<54xf32, #tpu.memory_space<smem>>
    %113 = vector.broadcast %112 : f32 to vector<8x128xf32>
    %114 = arith.mulf %113, %9 : vector<8x128xf32>
    %115 = arith.addf %111, %114 : vector<8x128xf32>
    %c23 = arith.constant 23 : index
    %116 = memref.load %arg1[%c23] : memref<54xf32, #tpu.memory_space<smem>>
    %117 = vector.broadcast %116 : f32 to vector<8x128xf32>
    %118 = arith.mulf %117, %11 : vector<8x128xf32>
    %119 = arith.addf %115, %118 : vector<8x128xf32>
    %c24 = arith.constant 24 : index
    %120 = memref.load %arg1[%c24] : memref<54xf32, #tpu.memory_space<smem>>
    %121 = vector.broadcast %120 : f32 to vector<8x128xf32>
    %122 = arith.mulf %121, %13 : vector<8x128xf32>
    %123 = arith.addf %119, %122 : vector<8x128xf32>
    %c25 = arith.constant 25 : index
    %124 = memref.load %arg1[%c25] : memref<54xf32, #tpu.memory_space<smem>>
    %125 = vector.broadcast %124 : f32 to vector<8x128xf32>
    %126 = arith.mulf %125, %15 : vector<8x128xf32>
    %127 = arith.addf %123, %126 : vector<8x128xf32>
    %128 = arith.negf %127 : vector<8x128xf32>
    %129 = math.exp %128 : vector<8x128xf32>
    %cst_25 = arith.constant 1.000000e+00 : f32
    %130 = vector.broadcast %cst_25 : f32 to vector<8x128xf32>
    %131 = arith.addf %130, %129 : vector<8x128xf32>
    %132 = arith.divf %130, %131 : vector<8x128xf32>
    %c35 = arith.constant 35 : index
    %133 = memref.load %arg1[%c35] : memref<54xf32, #tpu.memory_space<smem>>
    %c27 = arith.constant 27 : index
    %134 = memref.load %arg1[%c27] : memref<54xf32, #tpu.memory_space<smem>>
    %135 = vector.broadcast %134 : f32 to vector<8x128xf32>
    %136 = arith.mulf %135, %1 : vector<8x128xf32>
    %137 = vector.broadcast %133 : f32 to vector<8x128xf32>
    %138 = arith.addf %137, %136 : vector<8x128xf32>
    %c28 = arith.constant 28 : index
    %139 = memref.load %arg1[%c28] : memref<54xf32, #tpu.memory_space<smem>>
    %140 = vector.broadcast %139 : f32 to vector<8x128xf32>
    %141 = arith.mulf %140, %3 : vector<8x128xf32>
    %142 = arith.addf %138, %141 : vector<8x128xf32>
    %c29 = arith.constant 29 : index
    %143 = memref.load %arg1[%c29] : memref<54xf32, #tpu.memory_space<smem>>
    %144 = vector.broadcast %143 : f32 to vector<8x128xf32>
    %145 = arith.mulf %144, %5 : vector<8x128xf32>
    %146 = arith.addf %142, %145 : vector<8x128xf32>
    %c30 = arith.constant 30 : index
    %147 = memref.load %arg1[%c30] : memref<54xf32, #tpu.memory_space<smem>>
    %148 = vector.broadcast %147 : f32 to vector<8x128xf32>
    %149 = arith.mulf %148, %7 : vector<8x128xf32>
    %150 = arith.addf %146, %149 : vector<8x128xf32>
    %c31 = arith.constant 31 : index
    %151 = memref.load %arg1[%c31] : memref<54xf32, #tpu.memory_space<smem>>
    %152 = vector.broadcast %151 : f32 to vector<8x128xf32>
    %153 = arith.mulf %152, %9 : vector<8x128xf32>
    %154 = arith.addf %150, %153 : vector<8x128xf32>
    %c32 = arith.constant 32 : index
    %155 = memref.load %arg1[%c32] : memref<54xf32, #tpu.memory_space<smem>>
    %156 = vector.broadcast %155 : f32 to vector<8x128xf32>
    %157 = arith.mulf %156, %11 : vector<8x128xf32>
    %158 = arith.addf %154, %157 : vector<8x128xf32>
    %c33 = arith.constant 33 : index
    %159 = memref.load %arg1[%c33] : memref<54xf32, #tpu.memory_space<smem>>
    %160 = vector.broadcast %159 : f32 to vector<8x128xf32>
    %161 = arith.mulf %160, %13 : vector<8x128xf32>
    %162 = arith.addf %158, %161 : vector<8x128xf32>
    %c34 = arith.constant 34 : index
    %163 = memref.load %arg1[%c34] : memref<54xf32, #tpu.memory_space<smem>>
    %164 = vector.broadcast %163 : f32 to vector<8x128xf32>
    %165 = arith.mulf %164, %15 : vector<8x128xf32>
    %166 = arith.addf %162, %165 : vector<8x128xf32>
    %167 = arith.negf %166 : vector<8x128xf32>
    %168 = math.exp %167 : vector<8x128xf32>
    %cst_26 = arith.constant 1.000000e+00 : f32
    %169 = vector.broadcast %cst_26 : f32 to vector<8x128xf32>
    %170 = arith.addf %169, %168 : vector<8x128xf32>
    %171 = arith.divf %169, %170 : vector<8x128xf32>
    %c44 = arith.constant 44 : index
    %172 = memref.load %arg1[%c44] : memref<54xf32, #tpu.memory_space<smem>>
    %c36 = arith.constant 36 : index
    %173 = memref.load %arg1[%c36] : memref<54xf32, #tpu.memory_space<smem>>
    %174 = vector.broadcast %173 : f32 to vector<8x128xf32>
    %175 = arith.mulf %174, %1 : vector<8x128xf32>
    %176 = vector.broadcast %172 : f32 to vector<8x128xf32>
    %177 = arith.addf %176, %175 : vector<8x128xf32>
    %c37 = arith.constant 37 : index
    %178 = memref.load %arg1[%c37] : memref<54xf32, #tpu.memory_space<smem>>
    %179 = vector.broadcast %178 : f32 to vector<8x128xf32>
    %180 = arith.mulf %179, %3 : vector<8x128xf32>
    %181 = arith.addf %177, %180 : vector<8x128xf32>
    %c38 = arith.constant 38 : index
    %182 = memref.load %arg1[%c38] : memref<54xf32, #tpu.memory_space<smem>>
    %183 = vector.broadcast %182 : f32 to vector<8x128xf32>
    %184 = arith.mulf %183, %5 : vector<8x128xf32>
    %185 = arith.addf %181, %184 : vector<8x128xf32>
    %c39 = arith.constant 39 : index
    %186 = memref.load %arg1[%c39] : memref<54xf32, #tpu.memory_space<smem>>
    %187 = vector.broadcast %186 : f32 to vector<8x128xf32>
    %188 = arith.mulf %187, %7 : vector<8x128xf32>
    %189 = arith.addf %185, %188 : vector<8x128xf32>
    %c40 = arith.constant 40 : index
    %190 = memref.load %arg1[%c40] : memref<54xf32, #tpu.memory_space<smem>>
    %191 = vector.broadcast %190 : f32 to vector<8x128xf32>
    %192 = arith.mulf %191, %9 : vector<8x128xf32>
    %193 = arith.addf %189, %192 : vector<8x128xf32>
    %c41 = arith.constant 41 : index
    %194 = memref.load %arg1[%c41] : memref<54xf32, #tpu.memory_space<smem>>
    %195 = vector.broadcast %194 : f32 to vector<8x128xf32>
    %196 = arith.mulf %195, %11 : vector<8x128xf32>
    %197 = arith.addf %193, %196 : vector<8x128xf32>
    %c42 = arith.constant 42 : index
    %198 = memref.load %arg1[%c42] : memref<54xf32, #tpu.memory_space<smem>>
    %199 = vector.broadcast %198 : f32 to vector<8x128xf32>
    %200 = arith.mulf %199, %13 : vector<8x128xf32>
    %201 = arith.addf %197, %200 : vector<8x128xf32>
    %c43 = arith.constant 43 : index
    %202 = memref.load %arg1[%c43] : memref<54xf32, #tpu.memory_space<smem>>
    %203 = vector.broadcast %202 : f32 to vector<8x128xf32>
    %204 = arith.mulf %203, %15 : vector<8x128xf32>
    %205 = arith.addf %201, %204 : vector<8x128xf32>
    %206 = arith.negf %205 : vector<8x128xf32>
    %207 = math.exp %206 : vector<8x128xf32>
    %cst_27 = arith.constant 1.000000e+00 : f32
    %208 = vector.broadcast %cst_27 : f32 to vector<8x128xf32>
    %209 = arith.addf %208, %207 : vector<8x128xf32>
    %210 = arith.divf %208, %209 : vector<8x128xf32>
    %c53 = arith.constant 53 : index
    %211 = memref.load %arg1[%c53] : memref<54xf32, #tpu.memory_space<smem>>
    %c45 = arith.constant 45 : index
    %212 = memref.load %arg1[%c45] : memref<54xf32, #tpu.memory_space<smem>>
    %213 = vector.broadcast %212 : f32 to vector<8x128xf32>
    %214 = arith.mulf %213, %1 : vector<8x128xf32>
    %215 = vector.broadcast %211 : f32 to vector<8x128xf32>
    %216 = arith.addf %215, %214 : vector<8x128xf32>
    %c46 = arith.constant 46 : index
    %217 = memref.load %arg1[%c46] : memref<54xf32, #tpu.memory_space<smem>>
    %218 = vector.broadcast %217 : f32 to vector<8x128xf32>
    %219 = arith.mulf %218, %3 : vector<8x128xf32>
    %220 = arith.addf %216, %219 : vector<8x128xf32>
    %c47 = arith.constant 47 : index
    %221 = memref.load %arg1[%c47] : memref<54xf32, #tpu.memory_space<smem>>
    %222 = vector.broadcast %221 : f32 to vector<8x128xf32>
    %223 = arith.mulf %222, %5 : vector<8x128xf32>
    %224 = arith.addf %220, %223 : vector<8x128xf32>
    %c48 = arith.constant 48 : index
    %225 = memref.load %arg1[%c48] : memref<54xf32, #tpu.memory_space<smem>>
    %226 = vector.broadcast %225 : f32 to vector<8x128xf32>
    %227 = arith.mulf %226, %7 : vector<8x128xf32>
    %228 = arith.addf %224, %227 : vector<8x128xf32>
    %c49 = arith.constant 49 : index
    %229 = memref.load %arg1[%c49] : memref<54xf32, #tpu.memory_space<smem>>
    %230 = vector.broadcast %229 : f32 to vector<8x128xf32>
    %231 = arith.mulf %230, %9 : vector<8x128xf32>
    %232 = arith.addf %228, %231 : vector<8x128xf32>
    %c50 = arith.constant 50 : index
    %233 = memref.load %arg1[%c50] : memref<54xf32, #tpu.memory_space<smem>>
    %234 = vector.broadcast %233 : f32 to vector<8x128xf32>
    %235 = arith.mulf %234, %11 : vector<8x128xf32>
    %236 = arith.addf %232, %235 : vector<8x128xf32>
    %c51 = arith.constant 51 : index
    %237 = memref.load %arg1[%c51] : memref<54xf32, #tpu.memory_space<smem>>
    %238 = vector.broadcast %237 : f32 to vector<8x128xf32>
    %239 = arith.mulf %238, %13 : vector<8x128xf32>
    %240 = arith.addf %236, %239 : vector<8x128xf32>
    %c52 = arith.constant 52 : index
    %241 = memref.load %arg1[%c52] : memref<54xf32, #tpu.memory_space<smem>>
    %242 = vector.broadcast %241 : f32 to vector<8x128xf32>
    %243 = arith.mulf %242, %15 : vector<8x128xf32>
    %244 = arith.addf %240, %243 : vector<8x128xf32>
    %245 = arith.negf %244 : vector<8x128xf32>
    %246 = math.exp %245 : vector<8x128xf32>
    %cst_28 = arith.constant 1.000000e+00 : f32
    %247 = vector.broadcast %cst_28 : f32 to vector<8x128xf32>
    %248 = arith.addf %247, %246 : vector<8x128xf32>
    %249 = arith.divf %247, %248 : vector<8x128xf32>
    %c6_29 = arith.constant 6 : index
    %250 = memref.load %arg2[%c6_29] : memref<28xf32, #tpu.memory_space<smem>>
    %c0_30 = arith.constant 0 : index
    %251 = memref.load %arg2[%c0_30] : memref<28xf32, #tpu.memory_space<smem>>
    %252 = vector.broadcast %251 : f32 to vector<8x128xf32>
    %253 = arith.mulf %252, %54 : vector<8x128xf32>
    %254 = vector.broadcast %250 : f32 to vector<8x128xf32>
    %255 = arith.addf %254, %253 : vector<8x128xf32>
    %c1_31 = arith.constant 1 : index
    %256 = memref.load %arg2[%c1_31] : memref<28xf32, #tpu.memory_space<smem>>
    %257 = vector.broadcast %256 : f32 to vector<8x128xf32>
    %258 = arith.mulf %257, %93 : vector<8x128xf32>
    %259 = arith.addf %255, %258 : vector<8x128xf32>
    %c2_32 = arith.constant 2 : index
    %260 = memref.load %arg2[%c2_32] : memref<28xf32, #tpu.memory_space<smem>>
    %261 = vector.broadcast %260 : f32 to vector<8x128xf32>
    %262 = arith.mulf %261, %132 : vector<8x128xf32>
    %263 = arith.addf %259, %262 : vector<8x128xf32>
    %c3_33 = arith.constant 3 : index
    %264 = memref.load %arg2[%c3_33] : memref<28xf32, #tpu.memory_space<smem>>
    %265 = vector.broadcast %264 : f32 to vector<8x128xf32>
    %266 = arith.mulf %265, %171 : vector<8x128xf32>
    %267 = arith.addf %263, %266 : vector<8x128xf32>
    %c4_34 = arith.constant 4 : index
    %268 = memref.load %arg2[%c4_34] : memref<28xf32, #tpu.memory_space<smem>>
    %269 = vector.broadcast %268 : f32 to vector<8x128xf32>
    %270 = arith.mulf %269, %210 : vector<8x128xf32>
    %271 = arith.addf %267, %270 : vector<8x128xf32>
    %c5_35 = arith.constant 5 : index
    %272 = memref.load %arg2[%c5_35] : memref<28xf32, #tpu.memory_space<smem>>
    %273 = vector.broadcast %272 : f32 to vector<8x128xf32>
    %274 = arith.mulf %273, %249 : vector<8x128xf32>
    %275 = arith.addf %271, %274 : vector<8x128xf32>
    %276 = arith.negf %275 : vector<8x128xf32>
    %277 = math.exp %276 : vector<8x128xf32>
    %cst_36 = arith.constant 1.000000e+00 : f32
    %278 = vector.broadcast %cst_36 : f32 to vector<8x128xf32>
    %279 = arith.addf %278, %277 : vector<8x128xf32>
    %280 = arith.divf %278, %279 : vector<8x128xf32>
    %c13_37 = arith.constant 13 : index
    %281 = memref.load %arg2[%c13_37] : memref<28xf32, #tpu.memory_space<smem>>
    %c7_38 = arith.constant 7 : index
    %282 = memref.load %arg2[%c7_38] : memref<28xf32, #tpu.memory_space<smem>>
    %283 = vector.broadcast %282 : f32 to vector<8x128xf32>
    %284 = arith.mulf %283, %54 : vector<8x128xf32>
    %285 = vector.broadcast %281 : f32 to vector<8x128xf32>
    %286 = arith.addf %285, %284 : vector<8x128xf32>
    %c8_39 = arith.constant 8 : index
    %287 = memref.load %arg2[%c8_39] : memref<28xf32, #tpu.memory_space<smem>>
    %288 = vector.broadcast %287 : f32 to vector<8x128xf32>
    %289 = arith.mulf %288, %93 : vector<8x128xf32>
    %290 = arith.addf %286, %289 : vector<8x128xf32>
    %c9_40 = arith.constant 9 : index
    %291 = memref.load %arg2[%c9_40] : memref<28xf32, #tpu.memory_space<smem>>
    %292 = vector.broadcast %291 : f32 to vector<8x128xf32>
    %293 = arith.mulf %292, %132 : vector<8x128xf32>
    %294 = arith.addf %290, %293 : vector<8x128xf32>
    %c10_41 = arith.constant 10 : index
    %295 = memref.load %arg2[%c10_41] : memref<28xf32, #tpu.memory_space<smem>>
    %296 = vector.broadcast %295 : f32 to vector<8x128xf32>
    %297 = arith.mulf %296, %171 : vector<8x128xf32>
    %298 = arith.addf %294, %297 : vector<8x128xf32>
    %c11_42 = arith.constant 11 : index
    %299 = memref.load %arg2[%c11_42] : memref<28xf32, #tpu.memory_space<smem>>
    %300 = vector.broadcast %299 : f32 to vector<8x128xf32>
    %301 = arith.mulf %300, %210 : vector<8x128xf32>
    %302 = arith.addf %298, %301 : vector<8x128xf32>
    %c12_43 = arith.constant 12 : index
    %303 = memref.load %arg2[%c12_43] : memref<28xf32, #tpu.memory_space<smem>>
    %304 = vector.broadcast %303 : f32 to vector<8x128xf32>
    %305 = arith.mulf %304, %249 : vector<8x128xf32>
    %306 = arith.addf %302, %305 : vector<8x128xf32>
    %307 = arith.negf %306 : vector<8x128xf32>
    %308 = math.exp %307 : vector<8x128xf32>
    %cst_44 = arith.constant 1.000000e+00 : f32
    %309 = vector.broadcast %cst_44 : f32 to vector<8x128xf32>
    %310 = arith.addf %309, %308 : vector<8x128xf32>
    %311 = arith.divf %309, %310 : vector<8x128xf32>
    %c20_45 = arith.constant 20 : index
    %312 = memref.load %arg2[%c20_45] : memref<28xf32, #tpu.memory_space<smem>>
    %c14_46 = arith.constant 14 : index
    %313 = memref.load %arg2[%c14_46] : memref<28xf32, #tpu.memory_space<smem>>
    %314 = vector.broadcast %313 : f32 to vector<8x128xf32>
    %315 = arith.mulf %314, %54 : vector<8x128xf32>
    %316 = vector.broadcast %312 : f32 to vector<8x128xf32>
    %317 = arith.addf %316, %315 : vector<8x128xf32>
    %c15_47 = arith.constant 15 : index
    %318 = memref.load %arg2[%c15_47] : memref<28xf32, #tpu.memory_space<smem>>
    %319 = vector.broadcast %318 : f32 to vector<8x128xf32>
    %320 = arith.mulf %319, %93 : vector<8x128xf32>
    %321 = arith.addf %317, %320 : vector<8x128xf32>
    %c16_48 = arith.constant 16 : index
    %322 = memref.load %arg2[%c16_48] : memref<28xf32, #tpu.memory_space<smem>>
    %323 = vector.broadcast %322 : f32 to vector<8x128xf32>
    %324 = arith.mulf %323, %132 : vector<8x128xf32>
    %325 = arith.addf %321, %324 : vector<8x128xf32>
    %c17_49 = arith.constant 17 : index
    %326 = memref.load %arg2[%c17_49] : memref<28xf32, #tpu.memory_space<smem>>
    %327 = vector.broadcast %326 : f32 to vector<8x128xf32>
    %328 = arith.mulf %327, %171 : vector<8x128xf32>
    %329 = arith.addf %325, %328 : vector<8x128xf32>
    %c18_50 = arith.constant 18 : index
    %330 = memref.load %arg2[%c18_50] : memref<28xf32, #tpu.memory_space<smem>>
    %331 = vector.broadcast %330 : f32 to vector<8x128xf32>
    %332 = arith.mulf %331, %210 : vector<8x128xf32>
    %333 = arith.addf %329, %332 : vector<8x128xf32>
    %c19_51 = arith.constant 19 : index
    %334 = memref.load %arg2[%c19_51] : memref<28xf32, #tpu.memory_space<smem>>
    %335 = vector.broadcast %334 : f32 to vector<8x128xf32>
    %336 = arith.mulf %335, %249 : vector<8x128xf32>
    %337 = arith.addf %333, %336 : vector<8x128xf32>
    %338 = arith.negf %337 : vector<8x128xf32>
    %339 = math.exp %338 : vector<8x128xf32>
    %cst_52 = arith.constant 1.000000e+00 : f32
    %340 = vector.broadcast %cst_52 : f32 to vector<8x128xf32>
    %341 = arith.addf %340, %339 : vector<8x128xf32>
    %342 = arith.divf %340, %341 : vector<8x128xf32>
    %c27_53 = arith.constant 27 : index
    %343 = memref.load %arg2[%c27_53] : memref<28xf32, #tpu.memory_space<smem>>
    %c21_54 = arith.constant 21 : index
    %344 = memref.load %arg2[%c21_54] : memref<28xf32, #tpu.memory_space<smem>>
    %345 = vector.broadcast %344 : f32 to vector<8x128xf32>
    %346 = arith.mulf %345, %54 : vector<8x128xf32>
    %347 = vector.broadcast %343 : f32 to vector<8x128xf32>
    %348 = arith.addf %347, %346 : vector<8x128xf32>
    %c22_55 = arith.constant 22 : index
    %349 = memref.load %arg2[%c22_55] : memref<28xf32, #tpu.memory_space<smem>>
    %350 = vector.broadcast %349 : f32 to vector<8x128xf32>
    %351 = arith.mulf %350, %93 : vector<8x128xf32>
    %352 = arith.addf %348, %351 : vector<8x128xf32>
    %c23_56 = arith.constant 23 : index
    %353 = memref.load %arg2[%c23_56] : memref<28xf32, #tpu.memory_space<smem>>
    %354 = vector.broadcast %353 : f32 to vector<8x128xf32>
    %355 = arith.mulf %354, %132 : vector<8x128xf32>
    %356 = arith.addf %352, %355 : vector<8x128xf32>
    %c24_57 = arith.constant 24 : index
    %357 = memref.load %arg2[%c24_57] : memref<28xf32, #tpu.memory_space<smem>>
    %358 = vector.broadcast %357 : f32 to vector<8x128xf32>
    %359 = arith.mulf %358, %171 : vector<8x128xf32>
    %360 = arith.addf %356, %359 : vector<8x128xf32>
    %c25_58 = arith.constant 25 : index
    %361 = memref.load %arg2[%c25_58] : memref<28xf32, #tpu.memory_space<smem>>
    %362 = vector.broadcast %361 : f32 to vector<8x128xf32>
    %363 = arith.mulf %362, %210 : vector<8x128xf32>
    %364 = arith.addf %360, %363 : vector<8x128xf32>
    %c26_59 = arith.constant 26 : index
    %365 = memref.load %arg2[%c26_59] : memref<28xf32, #tpu.memory_space<smem>>
    %366 = vector.broadcast %365 : f32 to vector<8x128xf32>
    %367 = arith.mulf %366, %249 : vector<8x128xf32>
    %368 = arith.addf %364, %367 : vector<8x128xf32>
    %369 = arith.negf %368 : vector<8x128xf32>
    %370 = math.exp %369 : vector<8x128xf32>
    %cst_60 = arith.constant 1.000000e+00 : f32
    %371 = vector.broadcast %cst_60 : f32 to vector<8x128xf32>
    %372 = arith.addf %371, %370 : vector<8x128xf32>
    %373 = arith.divf %371, %372 : vector<8x128xf32>
    %c4_61 = arith.constant 4 : index
    %374 = memref.load %arg3[%c4_61] : memref<5xf32, #tpu.memory_space<smem>>
    %c0_62 = arith.constant 0 : index
    %375 = memref.load %arg3[%c0_62] : memref<5xf32, #tpu.memory_space<smem>>
    %376 = vector.broadcast %375 : f32 to vector<8x128xf32>
    %377 = arith.mulf %376, %280 : vector<8x128xf32>
    %378 = vector.broadcast %374 : f32 to vector<8x128xf32>
    %379 = arith.addf %378, %377 : vector<8x128xf32>
    %c1_63 = arith.constant 1 : index
    %380 = memref.load %arg3[%c1_63] : memref<5xf32, #tpu.memory_space<smem>>
    %381 = vector.broadcast %380 : f32 to vector<8x128xf32>
    %382 = arith.mulf %381, %311 : vector<8x128xf32>
    %383 = arith.addf %379, %382 : vector<8x128xf32>
    %c2_64 = arith.constant 2 : index
    %384 = memref.load %arg3[%c2_64] : memref<5xf32, #tpu.memory_space<smem>>
    %385 = vector.broadcast %384 : f32 to vector<8x128xf32>
    %386 = arith.mulf %385, %342 : vector<8x128xf32>
    %387 = arith.addf %383, %386 : vector<8x128xf32>
    %c3_65 = arith.constant 3 : index
    %388 = memref.load %arg3[%c3_65] : memref<5xf32, #tpu.memory_space<smem>>
    %389 = vector.broadcast %388 : f32 to vector<8x128xf32>
    %390 = arith.mulf %389, %373 : vector<8x128xf32>
    %391 = arith.addf %387, %390 : vector<8x128xf32>
    %392 = arith.negf %391 : vector<8x128xf32>
    %393 = math.exp %392 : vector<8x128xf32>
    %cst_66 = arith.constant 1.000000e+00 : f32
    %394 = vector.broadcast %cst_66 : f32 to vector<8x128xf32>
    %395 = arith.addf %394, %393 : vector<8x128xf32>
    %396 = arith.divf %394, %395 : vector<8x128xf32>
    %c0_67 = arith.constant 0 : index
    %c0_68 = arith.constant 0 : index
    %397 = vector.load %arg5[%c0_67, %c0_68] : memref<8x128xf32, #tpu.memory_space<vmem>>, vector<8x128xf32>
    tpu.vector_store %arg5[%c0_67, %c0_68], %396 {strides = array<i32>} : memref<8x128xf32, #tpu.memory_space<vmem>>, vector<8x128xf32>,
    return
  }
  func.func @transform_0(%arg0: i32) -> i32 {
    %c0_i32 = arith.constant 0 : i32
    %c0_i32_0 = arith.constant 0 : i32
    return %c0_i32 : i32
  }
  func.func @transform_1(%arg0: i32) -> i32 {
    %c0_i32 = arith.constant 0 : i32
    %c0_i32_0 = arith.constant 0 : i32
    return %c0_i32 : i32
  }
  func.func @transform_2(%arg0: i32) -> i32 {
    %c0_i32 = arith.constant 0 : i32
    %c0_i32_0 = arith.constant 0 : i32
    return %c0_i32 : i32
  }
  func.func @transform_3(%arg0: i32) -> (i32, i32, i32) {
    %c0_i32 = arith.constant 0 : i32
    %c0_i32_0 = arith.constant 0 : i32
    %c0_i32_1 = arith.constant 0 : i32
    return %c0_i32, %arg0, %c0_i32_0 : i32, i32, i32
  }
  func.func @transform_4(%arg0: i32) -> (i32, i32) {
    %c0_i32 = arith.constant 0 : i32
    %c0_i32_0 = arith.constant 0 : i32
    return %arg0, %c0_i32 : i32, i32
  }
}

</mosaic_0001>

<llo_original>
// kernel: tpu_custom_call.1
$region0: #{tpu_custom_call.1}
  #allocation0 [shape = 'u32[]', space=smem, size = 0x4, offset = 0x4, fixed_abs, tag = 'smem constant byte address 0x4 - core index']
  #allocation1 [shape = 'u32[144,128]{1,0:T(1,128)}', space=vmem, size = 0x12000, scoped, tag = 'internal scratch']
  %s0 = inlined_call_operand.hbm [shape: f32[54], index: 0, kind: input, shape index: {}]
  %s1 = inlined_call_operand.vmem [shape: f32[28], index: 1, kind: input, shape index: {}]
  %s2 = inlined_call_operand.vmem [shape: f32[5], index: 2, kind: input, shape index: {}]
  %s3 = inlined_call_operand.hbm [shape: f32[8,16,128], index: 3, kind: input, shape index: {}]
  %s4 = inlined_call_operand.hbm [shape: f32[16,128], index: 4, kind: output, shape index: {}]
  %s5 = sld [smem:[#allocation0]]
  $region65: #{tpu_custom_call.1} parent=0
    _
  %s7 = ssub.s32 1, %s5
  %s8 = scalar_select 0, %s7, %s5
  $region1: #{tpu_custom_call.1} parent=0
    #allocation2 [shape = 'u8[512]{0}', space=smem, size = 0x200, scoped, tag = 'input window, operand 0, single buffered']
    #allocation3 [shape = 's32[2]{0}', space=sflag, size = 0x8, scoped, tag = 'scoped memory for tpu_custom_call.1']
    #allocation4 [shape = 's32[2]{0}', space=sflag, size = 0x8, scoped, tag = 'scoped memory for tpu_custom_call.1']
    #allocation5 [shape = 's32[2]{0}', space=sflag, size = 0x8, scoped, tag = 'scoped memory for tpu_custom_call.1']
    #allocation6 [shape = 's32[2]{0}', space=sflag, size = 0x8, scoped, tag = 'scoped memory for tpu_custom_call.1']
    #allocation7 [shape = 'u8[512]{0}', space=smem, size = 0x200, scoped, tag = 'input window, operand 1, single buffered']
    #allocation8 [shape = 'u8[512]{0}', space=smem, size = 0x200, scoped, tag = 'input window, operand 2, single buffered']
    #allocation9 [shape = 's32[1]{0}', space=sflag, size = 0x4, scoped, tag = 'scoped memory for tpu_custom_call.1']
    #allocation10 [shape = 'u8[65536]{0}', space=vmem, size = 0x10000, scoped, tag = 'input window, operand 3']
    #allocation11 [shape = 'u8[8192]{0}', space=vmem, size = 0x2000, scoped, tag = 'output window, operand 0']
    %9 = vsyncpa [#allocation5], 0
    %10 = vsyncpa [#allocation6], 0
    %11 = vsyncpa [#allocation9], 0
    %12 = vsyncpa [#allocation3], 0
    %s13 = scalar_lea.sflag [#allocation3], 1
    %14 = vsyncpa %s13, 0
    %15 = vsyncpa [#allocation4], 0
    %s16 = scalar_lea.sflag [#allocation4], 1
    %17 = vsyncpa %s16, 0
    loop: start=0, step=1, limit=4
    $region2: #{tpu_custom_call.1} parent=1 // loop_pre_header
      _
    $region3: #{tpu_custom_call.1} parent=1 // loop_header
      %s19 = sphi 0, %s23
      %p20 = scmp.ge.s32.totalorder %s19, 4
      %s27 = sphi 0, %s27
      %s29 = sphi 0, %s27
      %s30 = sphi 0, %s29
      %s44 = sphi 0, %s30
      %s48 = sphi 0, %s48
      %s50 = sphi 0, %s48
      %s51 = sphi 0, %s50
      %s65 = sphi 0, %s51
      %s69 = sphi 0, %s69
      %s71 = sphi 0, %s69
      %s72 = sphi 0, %s71
      %s86 = sphi 0, %s72
      %s92 = sphi 0, %s94
      %s95 = sphi 0, %s92
      %s96 = sphi 0, %s95
      %s112 = sphi 0, %s96
      %s118 = sphi 0, %s120
      %s121 = sphi 0, %s118
      %s122 = sphi 0, %s121
      %s138 = sphi 0, %s122
    $region4: #{tpu_custom_call.1} parent=1 // loop_header_branch
      %22 = sbr.rel (%p20) target = $region8
    $region5: #{tpu_custom_call.1} parent=1 // loop_body
      %s24 = ssub.s32 %s19, 1
      %s25 = ssub.s32 %s19, 2
      %s26 = sadd.s32 %s19, 1
      %s28 = sadd.s32 %s27, 1
      %p31 = scmp.eq.s32.totalorder %s19, 1
      %p32 = scmp.ne.s32.totalorder %s27, %s29
      %p33 = scmp.eq.s32.totalorder %s19, 0
      %p34 = por %p32, %p33
      %p35 = scmp.ne.s32.totalorder %s27, %s29
      %p36 = scmp.eq.s32.totalorder %s24, 1
      %p37 = por %p35, %p36
      %p38 = scmp.ne.s32.totalorder %s29, %s30
      %p39 = scmp.eq.s32.totalorder %s24, 0
      %p40 = por %p38, %p39
      %p41 = scmp.ne.s32.totalorder %s29, %s30
      %p42 = scmp.eq.s32.totalorder %s25, 1
      %p43 = por %p41, %p42
      %p45 = scmp.ne.s32.totalorder %s30, %s44
      %p46 = scmp.eq.s32.totalorder %s25, 0
      %p47 = por %p45, %p46
      %s49 = sadd.s32 %s48, 1
      %p52 = scmp.eq.s32.totalorder %s19, 1
      %p53 = scmp.ne.s32.totalorder %s48, %s50
      %p54 = scmp.eq.s32.totalorder %s19, 0
      %p55 = por %p53, %p54
      %p56 = scmp.ne.s32.totalorder %s48, %s50
      %p57 = scmp.eq.s32.totalorder %s24, 1
      %p58 = por %p56, %p57
      %p59 = scmp.ne.s32.totalorder %s50, %s51
      %p60 = scmp.eq.s32.totalorder %s24, 0
      %p61 = por %p59, %p60
      %p62 = scmp.ne.s32.totalorder %s50, %s51
      %p63 = scmp.eq.s32.totalorder %s25, 1
      %p64 = por %p62, %p63
      %p66 = scmp.ne.s32.totalorder %s51, %s65
      %p67 = scmp.eq.s32.totalorder %s25, 0
      %p68 = por %p66, %p67
      %s70 = sadd.s32 %s69, 1
      %p73 = scmp.eq.s32.totalorder %s19, 1
      %p74 = scmp.ne.s32.totalorder %s69, %s71
      %p75 = scmp.eq.s32.totalorder %s19, 0
      %p76 = por %p74, %p75
      %p77 = scmp.ne.s32.totalorder %s69, %s71
      %p78 = scmp.eq.s32.totalorder %s24, 1
      %p79 = por %p77, %p78
      %p80 = scmp.ne.s32.totalorder %s71, %s72
      %p81 = scmp.eq.s32.totalorder %s24, 0
      %p82 = por %p80, %p81
      %p83 = scmp.ne.s32.totalorder %s71, %s72
      %p84 = scmp.eq.s32.totalorder %s25, 1
      %p85 = por %p83, %p84
      %p87 = scmp.ne.s32.totalorder %s72, %s86
      %p88 = scmp.eq.s32.totalorder %s25, 0
      %p89 = por %p87, %p88
      %s90 = ssub.s32 %s19, %s26
      %p91 = scmp.eq.s32.totalorder %s90, 0
      %s93 = sadd.s32 %s92, 1
      %s94 = scalar_select %p91, %s92, %s93
      %p97 = pneg %p91
      %p98 = scmp.eq.s32.totalorder %s19, 1
      %p99 = por %p97, %p98
      %p100 = scmp.ne.s32.totalorder %s92, %s95
      %p101 = scmp.eq.s32.totalorder %s19, 0
      %p102 = por %p100, %p101
      %p103 = scmp.ne.s32.totalorder %s92, %s95
      %p104 = scmp.eq.s32.totalorder %s24, 1
      %p105 = por %p103, %p104
      %p106 = scmp.ne.s32.totalorder %s95, %s96
      %p107 = scmp.eq.s32.totalorder %s24, 0
      %p108 = por %p106, %p107
      %p109 = scmp.ne.s32.totalorder %s95, %s96
      %p110 = scmp.eq.s32.totalorder %s25, 1
      %p111 = por %p109, %p110
      %p113 = scmp.ne.s32.totalorder %s96, %s112
      %p114 = scmp.eq.s32.totalorder %s25, 0
      %p115 = por %p113, %p114
      %s116 = ssub.s32 %s19, %s26
      %p117 = scmp.eq.s32.totalorder %s116, 0
      %s119 = sadd.s32 %s118, 1
      %s120 = scalar_select %p117, %s118, %s119
      %p123 = pneg %p117
      %p124 = scmp.eq.s32.totalorder %s19, 1
      %p125 = por %p123, %p124
      %p126 = scmp.ne.s32.totalorder %s118, %s121
      %p127 = scmp.eq.s32.totalorder %s19, 0
      %p128 = por %p126, %p127
      %p129 = scmp.ne.s32.totalorder %s118, %s121
      %p130 = scmp.eq.s32.totalorder %s24, 1
      %p131 = por %p129, %p130
      %p132 = scmp.ne.s32.totalorder %s121, %s122
      %p133 = scmp.eq.s32.totalorder %s24, 0
      %p134 = por %p132, %p133
      %p135 = scmp.ne.s32.totalorder %s121, %s122
      %p136 = scmp.eq.s32.totalorder %s25, 1
      %p137 = por %p135, %p136
      %p139 = scmp.ne.s32.totalorder %s122, %s138
      %p140 = scmp.eq.s32.totalorder %s25, 0
      %p141 = por %p139, %p140
      %p142 = scmp.le.s32.totalorder 1, %s19
      %p143 = scmp.lt.s32.totalorder %s19, 3
      %p144 = pnand %p142, %p143
      %p145 = pneg %p144
      // Predicated region
      $region9: #{tpu_custom_call.1} parent=5 // pred_check
        _
      $region10: #{tpu_custom_call.1} parent=5 // pred_check_branch
        %147 = sbr.rel (%p144) target = $region12
      $region11: #{tpu_custom_call.1} parent=5 // pred_region
        %s148 = ssub.s32 %s19, 1
        // Predicated region
        $region13: #{tpu_custom_call.1} parent=11 // pred_check
          %p149 = pneg %p40
        $region14: #{tpu_custom_call.1} parent=11 // pred_check_branch
          %151 = sbr.rel (%p149) target = $region16
        $region15: #{tpu_custom_call.1} parent=11 // pred_region
          %s153 = ssub.s32 16, 16
          %154 = vsyncadd [#allocation5], %s153
          %157 = dma.hbm_to_smem %s0, 16, [#allocation2], [#allocation5]
        $region16: #{tpu_custom_call.1} parent=11 // pred_fallthru
          _
        // Predicated region
        $region17: #{tpu_custom_call.1} parent=11 // pred_check
          %p158 = pneg %p61
        $region18: #{tpu_custom_call.1} parent=11 // pred_check_branch
          %160 = sbr.rel (%p158) target = $region20
        $region19: #{tpu_custom_call.1} parent=11 // pred_region
          %s162 = ssub.s32 16, 16
          %163 = vsyncadd [#allocation6], %s162
          %s165 = sshll.u32 %s1, 4
          %s166 = int_to_ptr.vmem [resolvable:$true] %s165
          %168 = dma.vmem_to_smem %s166, 16, [#allocation7], [#allocation6]
        $region20: #{tpu_custom_call.1} parent=11 // pred_fallthru
          _
        // Predicated region
        $region21: #{tpu_custom_call.1} parent=11 // pred_check
          %p169 = pneg %p82
        $region22: #{tpu_custom_call.1} parent=11 // pred_check_branch
          %171 = sbr.rel (%p169) target = $region24
        $region23: #{tpu_custom_call.1} parent=11 // pred_region
          %s173 = ssub.s32 16, 16
          %174 = vsyncadd [#allocation9], %s173
          %s176 = sshll.u32 %s2, 4
          %s177 = int_to_ptr.vmem [resolvable:$true] %s176
          %179 = dma.vmem_to_smem %s177, 16, [#allocation8], [#allocation9]
        $region24: #{tpu_custom_call.1} parent=11 // pred_fallthru
          _
      $region12: #{tpu_custom_call.1} parent=5 // pred_fallthru
        _
      %p180 = scmp.lt.s32.totalorder %s19, 2
      // Predicated region
      $region25: #{tpu_custom_call.1} parent=5 // pred_check
        %p181 = pneg %p180
      $region26: #{tpu_custom_call.1} parent=5 // pred_check_branch
        %183 = sbr.rel (%p181) target = $region28
      $region27: #{tpu_custom_call.1} parent=5 // pred_region
        // Predicated region
        $region29: #{tpu_custom_call.1} parent=27 // pred_check
          %p184 = pneg %p102
        $region30: #{tpu_custom_call.1} parent=27 // pred_check_branch
          %186 = sbr.rel (%p184) target = $region32
        $region31: #{tpu_custom_call.1} parent=27 // pred_region
          %s187 = sand.u32 %s92, 1
          %s188 = scalar_lea.sflag [#allocation3], %s187
          %s189 = sand.u32 %s92, 1
          %s190 = smul.addr %s189, 64
          %s191 = scalar_lea.vmem [#allocation10], %s190
          %s193 = ssub.s32 1024, 1024
          %194 = vsyncadd %s188, %s193
          %s195 = smul.addr %s19, 128
          %s196 = scalar_lea.hbm %s3, %s195
          %s197 = sshll.u32 %s191, 4
          %s198 = int_to_ptr.vmem [resolvable:$true] %s197
          %203 = dma.hbm_to_vmem [thread:$0]  %s196, 1024, %s198, %s188, 256, 128, 8
        $region32: #{tpu_custom_call.1} parent=27 // pred_fallthru
          _
      $region28: #{tpu_custom_call.1} parent=5 // pred_fallthru
        _
      %p204 = scmp.le.s32.totalorder 1, %s19
      %p205 = scmp.lt.s32.totalorder %s19, 3
      %p206 = pnand %p204, %p205
      %p207 = pneg %p206
      // Predicated region
      $region33: #{tpu_custom_call.1} parent=5 // pred_check
        _
      $region34: #{tpu_custom_call.1} parent=5 // pred_check_branch
        %209 = sbr.rel (%p206) target = $region36
      $region35: #{tpu_custom_call.1} parent=5 // pred_region
        %s210 = ssub.s32 %s19, 1
        // Predicated region
        $region37: #{tpu_custom_call.1} parent=35 // pred_check
          %p211 = pneg %p40
        $region38: #{tpu_custom_call.1} parent=35 // pred_check_branch
          %213 = sbr.rel (%p211) target = $region40
        $region39: #{tpu_custom_call.1} parent=35 // pred_region
          %214 = dma.done [#allocation5], 16
        $region40: #{tpu_custom_call.1} parent=35 // pred_fallthru
          _
        // Predicated region
        $region41: #{tpu_custom_call.1} parent=35 // pred_check
          %p215 = pneg %p61
        $region42: #{tpu_custom_call.1} parent=35 // pred_check_branch
          %217 = sbr.rel (%p215) target = $region44
        $region43: #{tpu_custom_call.1} parent=35 // pred_region
          %218 = dma.done [#allocation6], 16
        $region44: #{tpu_custom_call.1} parent=35 // pred_fallthru
          _
        // Predicated region
        $region45: #{tpu_custom_call.1} parent=35 // pred_check
          %p219 = pneg %p82
        $region46: #{tpu_custom_call.1} parent=35 // pred_check_branch
          %221 = sbr.rel (%p219) target = $region48
        $region47: #{tpu_custom_call.1} parent=35 // pred_region
          %222 = dma.done [#allocation9], 16
        $region48: #{tpu_custom_call.1} parent=35 // pred_fallthru
          _
        %s223 = sand.u32 %s95, 1
        %s224 = scalar_lea.sflag [#allocation3], %s223
        %s225 = sand.u32 %s95, 1
        %s226 = smul.addr %s225, 64
        %s227 = scalar_lea.vmem [#allocation10], %s226
        // Predicated region
        $region49: #{tpu_custom_call.1} parent=35 // pred_check
          %p228 = pneg %p108
        $region50: #{tpu_custom_call.1} parent=35 // pred_check_branch
          %230 = sbr.rel (%p228) target = $region52
        $region51: #{tpu_custom_call.1} parent=35 // pred_region
          %231 = dma.done %s224, 1024
        $region52: #{tpu_custom_call.1} parent=35 // pred_fallthru
          _
        %232 = sfence
        %p233 = pneg %p40
        %p234 = pneg %p37
        %p235 = pneg %p61
        %p236 = pneg %p58
        %p237 = pneg %p82
        %p238 = pneg %p79
        %s239 = sand.u32 %s95, 1
        %s240 = scalar_lea.sflag [#allocation3], %s239
        %s241 = sand.u32 %s95, 1
        %s242 = smul.addr %s241, 64
        %s243 = scalar_lea.vmem [#allocation10], %s242
        %p244 = pneg %p108
        %p245 = pneg %p105
        %p246 = pneg %p134
        %p247 = pneg %p131
        %s248 = sand.u32 %s121, 1
        %s249 = scalar_lea.sflag [#allocation4], %s248
        %s250 = sand.u32 %s121, 1
        %s251 = smul.addr %s250, 8
        %s252 = scalar_lea.vmem [#allocation11], %s251
        %v253 = vld [vmem:[%s227] sm:$0xff]
        %s254 = scalar_lea.vmem %s227, 8 [#allocation10]
        %v255 = vld [vmem:[%s254] sm:$0xff]
        %s256 = scalar_lea.vmem %s227, 16 [#allocation10]
        %v257 = vld [vmem:[%s256] sm:$0xff]
        %s258 = scalar_lea.vmem %s227, 24 [#allocation10]
        %v259 = vld [vmem:[%s258] sm:$0xff]
        %s260 = scalar_lea.vmem %s227, 32 [#allocation10]
        %v261 = vld [vmem:[%s260] sm:$0xff]
        %s262 = scalar_lea.vmem %s227, 40 [#allocation10]
        %v263 = vld [vmem:[%s262] sm:$0xff]
        %s264 = scalar_lea.vmem %s227, 48 [#allocation10]
        %v265 = vld [vmem:[%s264] sm:$0xff]
        %s266 = scalar_lea.vmem %s227, 56 [#allocation10]
        %v267 = vld [vmem:[%s266] sm:$0xff]
        %s268 = sld [smem:[#allocation2 + $0x8]]
        %s269 = sld [smem:[#allocation2]]
        %v270 = vstv %s269
        %v271 = vmul.f32 %v270, %v253
        %v272 = vstv %s268
        %v273 = vadd.f32 %v272, %v271
        %s274 = sld [smem:[#allocation2 + $0x1]]
        %v275 = vstv %s274
        %v276 = vmul.f32 %v275, %v255
        %v277 = vadd.f32 %v273, %v276
        %s278 = sld [smem:[#allocation2 + $0x2]]
        %v279 = vstv %s278
        %v280 = vmul.f32 %v279, %v257
        %v281 = vadd.f32 %v277, %v280
        %s282 = sld [smem:[#allocation2 + $0x3]]
        %v283 = vstv %s282
        %v284 = vmul.f32 %v283, %v259
        %v285 = vadd.f32 %v281, %v284
        %s286 = sld [smem:[#allocation2 + $0x4]]
        %v287 = vstv %s286
        %v288 = vmul.f32 %v287, %v261
        %v289 = vadd.f32 %v285, %v288
        %s290 = sld [smem:[#allocation2 + $0x5]]
        %v291 = vstv %s290
        %v292 = vmul.f32 %v291, %v263
        %v293 = vadd.f32 %v289, %v292
        %s294 = sld [smem:[#allocation2 + $0x6]]
        %v295 = vstv %s294
        %v296 = vmul.f32 %v295, %v265
        %v297 = vadd.f32 %v293, %v296
        %s298 = sld [smem:[#allocation2 + $0x7]]
        %v299 = vstv %s298
        %v300 = vmul.f32 %v299, %v267
        %v301 = vadd.f32 %v297, %v300
        %v302 = vxor.u32 %v301, 2147483648
        %v303 = vmul.f32 %v302, 1.442695
        %v304 = vpow.pop %v303
        %v305 = vadd.f32 %v304, 1.0
        %v306 = vrcp.pop %v305
        %v307 = vmul.f32 1.0, %v306
        %s308 = sld [smem:[#allocation2 + $0x11]]
        %s309 = sld [smem:[#allocation2 + $0x9]]
        %v310 = vstv %s309
        %v311 = vmul.f32 %v310, %v253
        %v312 = vstv %s308
        %v313 = vadd.f32 %v312, %v311
        %s314 = sld [smem:[#allocation2 + $0xa]]
        %v315 = vstv %s314
        %v316 = vmul.f32 %v315, %v255
        %v317 = vadd.f32 %v313, %v316
        %s318 = sld [smem:[#allocation2 + $0xb]]
        %v319 = vstv %s318
        %v320 = vmul.f32 %v319, %v257
        %v321 = vadd.f32 %v317, %v320
        %s322 = sld [smem:[#allocation2 + $0xc]]
        %v323 = vstv %s322
        %v324 = vmul.f32 %v323, %v259
        %v325 = vadd.f32 %v321, %v324
        %s326 = sld [smem:[#allocation2 + $0xd]]
        %v327 = vstv %s326
        %v328 = vmul.f32 %v327, %v261
        %v329 = vadd.f32 %v325, %v328
        %s330 = sld [smem:[#allocation2 + $0xe]]
        %v331 = vstv %s330
        %v332 = vmul.f32 %v331, %v263
        %v333 = vadd.f32 %v329, %v332
        %s334 = sld [smem:[#allocation2 + $0xf]]
        %v335 = vstv %s334
        %v336 = vmul.f32 %v335, %v265
        %v337 = vadd.f32 %v333, %v336
        %s338 = sld [smem:[#allocation2 + $0x10]]
        %v339 = vstv %s338
        %v340 = vmul.f32 %v339, %v267
        %v341 = vadd.f32 %v337, %v340
        %v342 = vxor.u32 %v341, 2147483648
        %v343 = vmul.f32 %v342, 1.442695
        %v344 = vpow.pop %v343
        %v345 = vadd.f32 %v344, 1.0
        %v346 = vrcp.pop %v345
        %v347 = vmul.f32 1.0, %v346
        %s348 = sld [smem:[#allocation2 + $0x1a]]
        %s349 = sld [smem:[#allocation2 + $0x12]]
        %v350 = vstv %s349
        %v351 = vmul.f32 %v350, %v253
        %v352 = vstv %s348
        %v353 = vadd.f32 %v352, %v351
        %s354 = sld [smem:[#allocation2 + $0x13]]
        %v355 = vstv %s354
        %v356 = vmul.f32 %v355, %v255
        %v357 = vadd.f32 %v353, %v356
        %s358 = sld [smem:[#allocation2 + $0x14]]
        %v359 = vstv %s358
        %v360 = vmul.f32 %v359, %v257
        %v361 = vadd.f32 %v357, %v360
        %s362 = sld [smem:[#allocation2 + $0x15]]
        %v363 = vstv %s362
        %v364 = vmul.f32 %v363, %v259
        %v365 = vadd.f32 %v361, %v364
        %s366 = sld [smem:[#allocation2 + $0x16]]
        %v367 = vstv %s366
        %v368 = vmul.f32 %v367, %v261
        %v369 = vadd.f32 %v365, %v368
        %s370 = sld [smem:[#allocation2 + $0x17]]
        %v371 = vstv %s370
        %v372 = vmul.f32 %v371, %v263
        %v373 = vadd.f32 %v369, %v372
        %s374 = sld [smem:[#allocation2 + $0x18]]
        %v375 = vstv %s374
        %v376 = vmul.f32 %v375, %v265
        %v377 = vadd.f32 %v373, %v376
        %s378 = sld [smem:[#allocation2 + $0x19]]
        %v379 = vstv %s378
        %v380 = vmul.f32 %v379, %v267
        %v381 = vadd.f32 %v377, %v380
        %v382 = vxor.u32 %v381, 2147483648
        %v383 = vmul.f32 %v382, 1.442695
        %v384 = vpow.pop %v383
        %v385 = vadd.f32 %v384, 1.0
        %v386 = vrcp.pop %v385
        %v387 = vmul.f32 1.0, %v386
        %s388 = sld [smem:[#allocation2 + $0x23]]
        %s389 = sld [smem:[#allocation2 + $0x1b]]
        %v390 = vstv %s389
        %v391 = vmul.f32 %v390, %v253
        %v392 = vstv %s388
        %v393 = vadd.f32 %v392, %v391
        %s394 = sld [smem:[#allocation2 + $0x1c]]
        %v395 = vstv %s394
        %v396 = vmul.f32 %v395, %v255
        %v397 = vadd.f32 %v393, %v396
        %s398 = sld [smem:[#allocation2 + $0x1d]]
        %v399 = vstv %s398
        %v400 = vmul.f32 %v399, %v257
        %v401 = vadd.f32 %v397, %v400
        %s402 = sld [smem:[#allocation2 + $0x1e]]
        %v403 = vstv %s402
        %v404 = vmul.f32 %v403, %v259
        %v405 = vadd.f32 %v401, %v404
        %s406 = sld [smem:[#allocation2 + $0x1f]]
        %v407 = vstv %s406
        %v408 = vmul.f32 %v407, %v261
        %v409 = vadd.f32 %v405, %v408
        %s410 = sld [smem:[#allocation2 + $0x20]]
        %v411 = vstv %s410
        %v412 = vmul.f32 %v411, %v263
        %v413 = vadd.f32 %v409, %v412
        %s414 = sld [smem:[#allocation2 + $0x21]]
        %v415 = vstv %s414
        %v416 = vmul.f32 %v415, %v265
        %v417 = vadd.f32 %v413, %v416
        %s418 = sld [smem:[#allocation2 + $0x22]]
        %v419 = vstv %s418
        %v420 = vmul.f32 %v419, %v267
        %v421 = vadd.f32 %v417, %v420
        %v422 = vxor.u32 %v421, 2147483648
        %v423 = vmul.f32 %v422, 1.442695
        %v424 = vpow.pop %v423
        %v425 = vadd.f32 %v424, 1.0
        %v426 = vrcp.pop %v425
        %v427 = vmul.f32 1.0, %v426
        %s428 = sld [smem:[#allocation2 + $0x2c]]
        %s429 = sld [smem:[#allocation2 + $0x24]]
        %v430 = vstv %s429
        %v431 = vmul.f32 %v430, %v253
        %v432 = vstv %s428
        %v433 = vadd.f32 %v432, %v431
        %s434 = sld [smem:[#allocation2 + $0x25]]
        %v435 = vstv %s434
        %v436 = vmul.f32 %v435, %v255
        %v437 = vadd.f32 %v433, %v436
        %s438 = sld [smem:[#allocation2 + $0x26]]
        %v439 = vstv %s438
        %v440 = vmul.f32 %v439, %v257
        %v441 = vadd.f32 %v437, %v440
        %s442 = sld [smem:[#allocation2 + $0x27]]
        %v443 = vstv %s442
        %v444 = vmul.f32 %v443, %v259
        %v445 = vadd.f32 %v441, %v444
        %s446 = sld [smem:[#allocation2 + $0x28]]
        %v447 = vstv %s446
        %v448 = vmul.f32 %v447, %v261
        %v449 = vadd.f32 %v445, %v448
        %s450 = sld [smem:[#allocation2 + $0x29]]
        %v451 = vstv %s450
        %v452 = vmul.f32 %v451, %v263
        %v453 = vadd.f32 %v449, %v452
        %s454 = sld [smem:[#allocation2 + $0x2a]]
        %v455 = vstv %s454
        %v456 = vmul.f32 %v455, %v265
        %v457 = vadd.f32 %v453, %v456
        %s458 = sld [smem:[#allocation2 + $0x2b]]
        %v459 = vstv %s458
        %v460 = vmul.f32 %v459, %v267
        %v461 = vadd.f32 %v457, %v460
        %v462 = vxor.u32 %v461, 2147483648
        %v463 = vmul.f32 %v462, 1.442695
        %v464 = vpow.pop %v463
        %v465 = vadd.f32 %v464, 1.0
        %v466 = vrcp.pop %v465
        %v467 = vmul.f32 1.0, %v466
        %s468 = sld [smem:[#allocation2 + $0x35]]
        %s469 = sld [smem:[#allocation2 + $0x2d]]
        %v470 = vstv %s469
        %v471 = vmul.f32 %v470, %v253
        %v472 = vstv %s468
        %v473 = vadd.f32 %v472, %v471
        %s474 = sld [smem:[#allocation2 + $0x2e]]
        %v475 = vstv %s474
        %v476 = vmul.f32 %v475, %v255
        %v477 = vadd.f32 %v473, %v476
        %s478 = sld [smem:[#allocation2 + $0x2f]]
        %v479 = vstv %s478
        %v480 = vmul.f32 %v479, %v257
        %v481 = vadd.f32 %v477, %v480
        %s482 = sld [smem:[#allocation2 + $0x30]]
        %v483 = vstv %s482
        %v484 = vmul.f32 %v483, %v259
        %v485 = vadd.f32 %v481, %v484
        %s486 = sld [smem:[#allocation2 + $0x31]]
        %v487 = vstv %s486
        %v488 = vmul.f32 %v487, %v261
        %v489 = vadd.f32 %v485, %v488
        %s490 = sld [smem:[#allocation2 + $0x32]]
        %v491 = vstv %s490
        %v492 = vmul.f32 %v491, %v263
        %v493 = vadd.f32 %v489, %v492
        %s494 = sld [smem:[#allocation2 + $0x33]]
        %v495 = vstv %s494
        %v496 = vmul.f32 %v495, %v265
        %v497 = vadd.f32 %v493, %v496
        %s498 = sld [smem:[#allocation2 + $0x34]]
        %v499 = vstv %s498
        %v500 = vmul.f32 %v499, %v267
        %v501 = vadd.f32 %v497, %v500
        %v502 = vxor.u32 %v501, 2147483648
        %v503 = vmul.f32 %v502, 1.442695
        %v504 = vpow.pop %v503
        %v505 = vadd.f32 %v504, 1.0
        %v506 = vrcp.pop %v505
        %v507 = vmul.f32 1.0, %v506
        %s508 = sld [smem:[#allocation7 + $0x6]]
        %s509 = sld [smem:[#allocation7]]
        %v510 = vstv %s509
        %v511 = vmul.f32 %v510, %v307
        %v512 = vstv %s508
        %v513 = vadd.f32 %v512, %v511
        %s514 = sld [smem:[#allocation7 + $0x1]]
        %v515 = vstv %s514
        %v516 = vmul.f32 %v515, %v347
        %v517 = vadd.f32 %v513, %v516
        %s518 = sld [smem:[#allocation7 + $0x2]]
        %v519 = vstv %s518
        %v520 = vmul.f32 %v519, %v387
        %v521 = vadd.f32 %v517, %v520
        %s522 = sld [smem:[#allocation7 + $0x3]]
        %v523 = vstv %s522
        %v524 = vmul.f32 %v523, %v427
        %v525 = vadd.f32 %v521, %v524
        %s526 = sld [smem:[#allocation7 + $0x4]]
        %v527 = vstv %s526
        %v528 = vmul.f32 %v527, %v467
        %v529 = vadd.f32 %v525, %v528
        %s530 = sld [smem:[#allocation7 + $0x5]]
        %v531 = vstv %s530
        %v532 = vmul.f32 %v531, %v507
        %v533 = vadd.f32 %v529, %v532
        %v534 = vxor.u32 %v533, 2147483648
        %v535 = vmul.f32 %v534, 1.442695
        %v536 = vpow.pop %v535
        %v537 = vadd.f32 %v536, 1.0
        %v538 = vrcp.pop %v537
        %v539 = vmul.f32 1.0, %v538
        %s540 = sld [smem:[#allocation7 + $0xd]]
        %s541 = sld [smem:[#allocation7 + $0x7]]
        %v542 = vstv %s541
        %v543 = vmul.f32 %v542, %v307
        %v544 = vstv %s540
        %v545 = vadd.f32 %v544, %v543
        %s546 = sld [smem:[#allocation7 + $0x8]]
        %v547 = vstv %s546
        %v548 = vmul.f32 %v547, %v347
        %v549 = vadd.f32 %v545, %v548
        %s550 = sld [smem:[#allocation7 + $0x9]]
        %v551 = vstv %s550
        %v552 = vmul.f32 %v551, %v387
        %v553 = vadd.f32 %v549, %v552
        %s554 = sld [smem:[#allocation7 + $0xa]]
        %v555 = vstv %s554
        %v556 = vmul.f32 %v555, %v427
        %v557 = vadd.f32 %v553, %v556
        %s558 = sld [smem:[#allocation7 + $0xb]]
        %v559 = vstv %s558
        %v560 = vmul.f32 %v559, %v467
        %v561 = vadd.f32 %v557, %v560
        %s562 = sld [smem:[#allocation7 + $0xc]]
        %v563 = vstv %s562
        %v564 = vmul.f32 %v563, %v507
        %v565 = vadd.f32 %v561, %v564
        %v566 = vxor.u32 %v565, 2147483648
        %v567 = vmul.f32 %v566, 1.442695
        %v568 = vpow.pop %v567
        %v569 = vadd.f32 %v568, 1.0
        %v570 = vrcp.pop %v569
        %v571 = vmul.f32 1.0, %v570
        %s572 = sld [smem:[#allocation7 + $0x14]]
        %s573 = sld [smem:[#allocation7 + $0xe]]
        %v574 = vstv %s573
        %v575 = vmul.f32 %v574, %v307
        %v576 = vstv %s572
        %v577 = vadd.f32 %v576, %v575
        %s578 = sld [smem:[#allocation7 + $0xf]]
        %v579 = vstv %s578
        %v580 = vmul.f32 %v579, %v347
        %v581 = vadd.f32 %v577, %v580
        %s582 = sld [smem:[#allocation7 + $0x10]]
        %v583 = vstv %s582
        %v584 = vmul.f32 %v583, %v387
        %v585 = vadd.f32 %v581, %v584
        %s586 = sld [smem:[#allocation7 + $0x11]]
        %v587 = vstv %s586
        %v588 = vmul.f32 %v587, %v427
        %v589 = vadd.f32 %v585, %v588
        %s590 = sld [smem:[#allocation7 + $0x12]]
        %v591 = vstv %s590
        %v592 = vmul.f32 %v591, %v467
        %v593 = vadd.f32 %v589, %v592
        %s594 = sld [smem:[#allocation7 + $0x13]]
        %v595 = vstv %s594
        %v596 = vmul.f32 %v595, %v507
        %v597 = vadd.f32 %v593, %v596
        %v598 = vxor.u32 %v597, 2147483648
        %v599 = vmul.f32 %v598, 1.442695
        %v600 = vpow.pop %v599
        %v601 = vadd.f32 %v600, 1.0
        %v602 = vrcp.pop %v601
        %v603 = vmul.f32 1.0, %v602
        %s604 = sld [smem:[#allocation7 + $0x1b]]
        %s605 = sld [smem:[#allocation7 + $0x15]]
        %v606 = vstv %s605
        %v607 = vmul.f32 %v606, %v307
        %v608 = vstv %s604
        %v609 = vadd.f32 %v608, %v607
        %s610 = sld [smem:[#allocation7 + $0x16]]
        %v611 = vstv %s610
        %v612 = vmul.f32 %v611, %v347
        %v613 = vadd.f32 %v609, %v612
        %s614 = sld [smem:[#allocation7 + $0x17]]
        %v615 = vstv %s614
        %v616 = vmul.f32 %v615, %v387
        %v617 = vadd.f32 %v613, %v616
        %s618 = sld [smem:[#allocation7 + $0x18]]
        %v619 = vstv %s618
        %v620 = vmul.f32 %v619, %v427
        %v621 = vadd.f32 %v617, %v620
        %s622 = sld [smem:[#allocation7 + $0x19]]
        %v623 = vstv %s622
        %v624 = vmul.f32 %v623, %v467
        %v625 = vadd.f32 %v621, %v624
        %s626 = sld [smem:[#allocation7 + $0x1a]]
        %v627 = vstv %s626
        %v628 = vmul.f32 %v627, %v507
        %v629 = vadd.f32 %v625, %v628
        %v630 = vxor.u32 %v629, 2147483648
        %v631 = vmul.f32 %v630, 1.442695
        %v632 = vpow.pop %v631
        %v633 = vadd.f32 %v632, 1.0
        %v634 = vrcp.pop %v633
        %v635 = vmul.f32 1.0, %v634
        %s636 = sld [smem:[#allocation8 + $0x4]]
        %s637 = sld [smem:[#allocation8]]
        %v638 = vstv %s637
        %v639 = vmul.f32 %v638, %v539
        %v640 = vstv %s636
        %v641 = vadd.f32 %v640, %v639
        %s642 = sld [smem:[#allocation8 + $0x1]]
        %v643 = vstv %s642
        %v644 = vmul.f32 %v643, %v571
        %v645 = vadd.f32 %v641, %v644
        %s646 = sld [smem:[#allocation8 + $0x2]]
        %v647 = vstv %s646
        %v648 = vmul.f32 %v647, %v603
        %v649 = vadd.f32 %v645, %v648
        %s650 = sld [smem:[#allocation8 + $0x3]]
        %v651 = vstv %s650
        %v652 = vmul.f32 %v651, %v635
        %v653 = vadd.f32 %v649, %v652
        %v654 = vxor.u32 %v653, 2147483648
        %v655 = vmul.f32 %v654, 1.442695
        %v656 = vpow.pop %v655
        %v657 = vadd.f32 %v656, 1.0
        %v658 = vrcp.pop %v657
        %v659 = vmul.f32 1.0, %v658
        %660 = vst [vmem:[%s252] sm:$0xff] %v659
        %s661 = sand.u32 %s121, 1
        %s662 = scalar_lea.sflag [#allocation4], %s661
        %s663 = sand.u32 %s121, 1
        %s664 = smul.addr %s663, 8
        %s665 = scalar_lea.vmem [#allocation11], %s664
        // Predicated region
        $region53: #{tpu_custom_call.1} parent=35 // pred_check
          %p666 = pneg %p131
        $region54: #{tpu_custom_call.1} parent=35 // pred_check_branch
          %668 = sbr.rel (%p666) target = $region56
        $region55: #{tpu_custom_call.1} parent=35 // pred_region
          %s670 = ssub.s32 128, 128
          %671 = vsyncadd %s662, %s670
          %s672 = smul.addr %s24, 128
          %s673 = scalar_lea.hbm %s4, %s672
          %s675 = sshll.u32 %s665, 4
          %s676 = int_to_ptr.vmem [resolvable:$true] %s675
          %678 = dma.vmem_to_hbm [thread:$0]  %s676, 128, %s673, %s662
        $region56: #{tpu_custom_call.1} parent=35 // pred_fallthru
          _
      $region36: #{tpu_custom_call.1} parent=5 // pred_fallthru
        _
      %p679 = scmp.le.s32.totalorder 2, %s19
      // Predicated region
      $region57: #{tpu_custom_call.1} parent=5 // pred_check
        %p680 = pneg %p679
      $region58: #{tpu_custom_call.1} parent=5 // pred_check_branch
        %682 = sbr.rel (%p680) target = $region60
      $region59: #{tpu_custom_call.1} parent=5 // pred_region
        %s683 = ssub.s32 %s19, 2
        // Predicated region
        $region61: #{tpu_custom_call.1} parent=59 // pred_check
          %p684 = pneg %p137
        $region62: #{tpu_custom_call.1} parent=59 // pred_check_branch
          %686 = sbr.rel (%p684) target = $region64
        $region63: #{tpu_custom_call.1} parent=59 // pred_region
          %s687 = sand.u32 %s122, 1
          %s688 = scalar_lea.sflag [#allocation4], %s687
          %s689 = sand.u32 %s122, 1
          %s690 = smul.addr %s689, 8
          %s691 = scalar_lea.vmem [#allocation11], %s690
          %692 = dma.done %s688, 128
        $region64: #{tpu_custom_call.1} parent=59 // pred_fallthru
          _
      $region60: #{tpu_custom_call.1} parent=5 // pred_fallthru
        _
    $region6: #{tpu_custom_call.1} parent=1 // loop_footer
      %s23 = sadd.s32 1, %s19
    $region7: #{tpu_custom_call.1} parent=1 // loop_footer_branch
      %18 = sbr.rel target = $region3
    $region8: #{tpu_custom_call.1} parent=1 // loop_exit
      _
    %693 = vsyncpa [#allocation3], 1
    %s694 = scalar_lea.sflag [#allocation3], 1
    %695 = vsyncpa %s694, 1
    %696 = vsyncpa [#allocation4], 1
    %s697 = scalar_lea.sflag [#allocation4], 1
    %698 = vsyncpa %s697, 1
    %699 = vsyncpa [#allocation5], 1
    %s700 = scalar_lea.sflag [#allocation5], 1
    %701 = vsyncpa %s700, 1
    %702 = vsyncpa [#allocation6], 1
    %s703 = scalar_lea.sflag [#allocation6], 1
    %704 = vsyncpa %s703, 1
    %705 = vsyncpa [#allocation9], 1

</llo_original>
